<compile_context>
chip_gen: v5e
topology: v5e:2x2
jax: 0.10.0
libtpu: 0.0.40
codegen_flags: <defaults>
</compile_context>

<pallas_src>
import functools

import jax
import jax.numpy as jnp
from jax.experimental import pallas as pl
from jax.experimental.pallas import tpu as pltpu


# ----------------------------- generation-aware knobs ------------------------
def _device_kind():
    try:
        return jax.devices()[0].device_kind.lower()
    except Exception:
        return ""


_KIND = _device_kind()
_IS_OLD_GEN = any(t in _KIND for t in ("v2", "v3", "v4", "v5"))  # weak f32 MXU, 128 MiB VMEM
_IS_V6 = "v6" in _KIND                                           # 128 MiB VMEM, big MXU
_IS_V7 = not (_IS_OLD_GEN or _IS_V6)                             # v7x / unknown: assume 64 MiB VMEM

# v5e: f32 MXU is scarce -> avoid the 2x-FLOP block-diagonal matmul there.
_USE_BLOCKDIAG = not _IS_OLD_GEN
# Row-tile ceiling + scoped-VMEM limit: 8 MiB in-block on v7x (~20 MiB total
# double-buffered), 16 MiB in-block on v5e/v6e (~40 MiB total).
_TN_MAX_DEFAULT = 4096 if _IS_V7 else 8192
_VMEM_LIMIT = (32 if _IS_V7 else 64) * 1024 * 1024


# ----------------------------------- kernels ---------------------------------
def _gavgpool_kernel_blockdiag(x_ref, p2_ref, o_ref):
    # x_ref: (TN, 2*HW), p2_ref: (2*HW, 2*HoWo) block-diag constant,
    # o_ref: (TN, 2*HoWo).  One K=2*HW, N=2*HoWo matmul -> full-width stores.
    o_ref[...] = jnp.dot(
        x_ref[...], p2_ref[...], preferred_element_type=jnp.float32
    ).astype(o_ref.dtype)


def _gavgpool_kernel_twodot(x_ref, p_ref, o_ref):
    # Half-FLOP variant for v5e: two (TN, HW) x (HW, HoWo) dots + lane concat.
    hw = p_ref.shape[0]
    p = p_ref[...]
    ya = jnp.dot(x_ref[:, :hw], p, preferred_element_type=jnp.float32)
    yb = jnp.dot(x_ref[:, hw:], p, preferred_element_type=jnp.float32)
    o_ref[...] = jnp.concatenate([ya, yb], axis=-1).astype(o_ref.dtype)


# ------------------------------ constant builders -----------------------------
def _pool_matrix(H, W):
    """(H*W, (H/2)*(W/2)) matrix with 0.25 at every 2x2 pooling-window position."""
    Wo = W // 2
    row = jnp.arange(H * W)
    h, w = row // W, row % W
    col = jnp.arange((H // 2) * Wo)
    i, j = col // Wo, col % Wo
    hit = (h[:, None] // 2 == i[None, :]) & (w[:, None] // 2 == j[None, :])
    return jnp.where(hit, 0.25, 0.0).astype(jnp.float32)


def _pool_matrix_blockdiag(H, W):
    """blockdiag(P, P): (2*H*W, 2*(H/2)*(W/2))."""
    p = _pool_matrix(H, W)
    z = jnp.zeros_like(p)
    top = jnp.concatenate([p, z], axis=1)
    bot = jnp.concatenate([z, p], axis=1)
    return jnp.concatenate([top, bot], axis=0)


# ------------------------------- tile selection -------------------------------
def _choose_tn(N2, tn_max):
    """Largest row tile that fits the VMEM budget; multiple of 8 whenever it
    splits the rows; on v7x use an even, near-equal block count so both
    TensorCores get balanced work."""
    if N2 <= tn_max:
        return N2                      # single (or full) block: no %8 requirement
    nblocks = -(-N2 // tn_max)         # cdiv
    if _IS_V7 and nblocks % 2:
        nblocks += 1                   # even block count -> megacore balance
    tn = -(-N2 // nblocks)             # near-equal blocks (no tiny ragged tail)
    tn = ((tn + 7) // 8) * 8           # sublane-aligned (BlockSpec rule)
    return N2 if tn >= N2 else tn


# ----------------------------------- wrapper ----------------------------------
@functools.partial(jax.jit, static_argnames=("kernel_size", "tn_max"))
def gavgpool2d(x, kernel_size=2, tn_max=_TN_MAX_DEFAULT):
    """x: (B, C, G, H, W) -> (B, C, G, H//2, W//2), group-wise 2x2 avg pool."""
    assert kernel_size == 2
    B, C, G, H, W = x.shape
    assert H % 2 == 0 and W % 2 == 0
    Ho, Wo = H // 2, W // 2
    HW, HoWo = H * W, Ho * Wo
    N = B * C * G

    xf = x.reshape(N, HW)              # contiguous reshape: free
    N2 = N // 2
    rem = N - 2 * N2                   # 0 or 1 leftover slab

    # Odd N (rare; N = B*C*G): peel the single leftover slab and pool it in
    # plain JAX (one 2x2 mean -- negligible) instead of zero-padding the whole
    # tensor.  Even N stays fully copy-free.
    last = None
    if rem:
        last = xf[2 * N2].reshape(Ho, 2, Wo, 2).mean(axis=(1, 3))[None].astype(x.dtype)
        if N2 == 0:
            return last.reshape(B, C, G, Ho, Wo)
        x_main = jax.lax.slice(xf, (0, 0), (2 * N2, HW))
    else:
        x_main = xf

    x2 = x_main.reshape(N2, 2 * HW)    # row m = [slab 2m | slab 2m+1]

    tn = _choose_tn(N2, tn_max)
    grid = (pl.cdiv(N2, tn),)

    if _USE_BLOCKDIAG:
        kernel = _gavgpool_kernel_blockdiag
        p = _pool_matrix_blockdiag(H, W).astype(x.dtype)   # (2*HW, 2*HoWo)
        flops = 2 * N2 * (2 * HW) * (2 * HoWo)
    else:
        kernel = _gavgpool_kernel_twodot
        p = _pool_matrix(H, W).astype(x.dtype)             # (HW, HoWo)
        flops = 2 * 2 * N2 * HW * HoWo

    itemsize = jnp.dtype(x.dtype).itemsize
    cost = pl.CostEstimate(
        flops=flops,
        transcendentals=0,
        bytes_accessed=itemsize * (N2 * 2 * HW + N2 * 2 * HoWo + p.size),
    )

    out2 = pl.pallas_call(
        kernel,
        out_shape=jax.ShapeDtypeStruct((N2, 2 * HoWo), x.dtype),
        grid=grid,
        in_specs=[
            pl.BlockSpec((tn, 2 * HW), lambda i: (i, 0)),
            pl.BlockSpec(p.shape, lambda i: (0, 0)),       # resident constant
        ],
        out_specs=pl.BlockSpec((tn, 2 * HoWo), lambda i: (i, 0)),
        compiler_params=pltpu.CompilerParams(
            dimension_semantics=("parallel",),              # shards grid across v7x's 2 TCs
            vmem_limit_bytes=_VMEM_LIMIT,
        ),
        cost_estimate=cost,
    )(x2, p)

    outf = out2.reshape(2 * N2, HoWo)
    if rem:
        outf = jnp.concatenate([outf, last], axis=0)
    return outf.reshape(B, C, G, Ho, Wo)


# ----------------------------------- checks -----------------------------------
def _reference(x):
    # Pure-JAX reference: 2x2 average pooling per group (NCGHW).
    B, C, G, H, W = x.shape
    xr = x.reshape(B, C, G, H // 2, 2, W // 2, 2)
    return xr.mean(axis=(4, 6))


if __name__ == "__main__":
    key = jax.random.PRNGKey(0)
    B, C, G, H, W = 2, 4, 3, 16, 16
    x = jax.random.normal(key, (B, C, G, H, W), dtype=jnp.float32)

    y = gavgpool2d(x)
    y = jax.block_until_ready(y)

    y_ref = _reference(x)
    assert y.shape == (B, C, G, H // 2, W // 2), y.shape
    assert jnp.allclose(y, y_ref, atol=1e-5, rtol=1e-5), "mismatch vs reference"

    print("KERNEL_OK")
</pallas_src>

<mosaic_0001>
module attributes {stable_mosaic.version = 11 : i64} {
  func.func @_gavgpool_kernel_blockdiag(%arg0: i32, %arg1: memref<12x512xf32, #tpu.memory_space<vmem>>, %arg2: memref<512x128xf32, #tpu.memory_space<vmem>>, %arg3: memref<12x128xf32, #tpu.memory_space<vmem>>) attributes {dimension_semantics = [#tpu.dimension_semantics<parallel>], iteration_bounds = array<i64: 1>, scalar_prefetch = 0 : i64, scratch_operands = 0 : i64, tpu.core_type = #tpu.core_type<tc>, window_params = [{transform_indices = @transform_0, window_bounds = array<i64: 12, 512>}, {pipeline_mode = #tpu.pipeline_mode<synchronous>, transform_indices = @transform_1, window_bounds = array<i64: 512, 128>}, {transform_indices = @transform_2, window_bounds = array<i64: 12, 128>}]} {
    %c0 = arith.constant 0 : index
    %c0_0 = arith.constant 0 : index
    %0 = vector.load %arg1[%c0, %c0_0] : memref<12x512xf32, #tpu.memory_space<vmem>>, vector<12x512xf32>
    %c0_1 = arith.constant 0 : index
    %c0_2 = arith.constant 0 : index
    %1 = vector.load %arg2[%c0_1, %c0_2] : memref<512x128xf32, #tpu.memory_space<vmem>>, vector<512x128xf32>
    %cst = arith.constant dense<0.000000e+00> : vector<12x128xf32>
    %2 = tpu.matmul %0, %1, %cst {dimension_numbers = #tpu.dot_dimension_numbers<[1], [0], [0], [1], [0, 0, 1, 1], [], []>} : vector<12x512xf32>, vector<512x128xf32>, vector<12x128xf32> -> vector<12x128xf32>
    %c0_3 = arith.constant 0 : index
    %c0_4 = arith.constant 0 : index
    %3 = vector.load %arg3[%c0_3, %c0_4] : memref<12x128xf32, #tpu.memory_space<vmem>>, vector<12x128xf32>
    tpu.vector_store %arg3[%c0_3, %c0_4], %2 {strides = array<i32>} : memref<12x128xf32, #tpu.memory_space<vmem>>, vector<12x128xf32>,
    return
  }
  func.func @transform_0(%arg0: i32) -> (i32, i32) {
    %c0_i32 = arith.constant 0 : i32
    %c0_i32_0 = arith.constant 0 : i32
    return %arg0, %c0_i32 : i32, i32
  }
  func.func @transform_1(%arg0: i32) -> (i32, i32) {
    %c0_i32 = arith.constant 0 : i32
    %c0_i32_0 = arith.constant 0 : i32
    %c0_i32_1 = arith.constant 0 : i32
    return %c0_i32, %c0_i32_0 : i32, i32
  }
  func.func @transform_2(%arg0: i32) -> (i32, i32) {
    %c0_i32 = arith.constant 0 : i32
    %c0_i32_0 = arith.constant 0 : i32
    return %arg0, %c0_i32 : i32, i32
  }
}

</mosaic_0001>

<llo_original>
// kernel: gavgpool2d.1
$region0: #{gavgpool2d.1}
  #allocation0 [shape = 'u32[]', space=smem, size = 0x4, offset = 0x4, fixed_abs, tag = 'smem constant byte address 0x4 - core index']
  #allocation1 [shape = 'u32[72,128]{1,0:T(1,128)}', space=vmem, size = 0x9000, scoped, tag = 'internal scratch']
  %s0 = inlined_call_operand.vmem [shape: f32[12,512], index: 0, kind: input, shape index: {}]
  %s1 = inlined_call_operand.vmem [shape: f32[512,128], index: 1, kind: input, shape index: {}]
  %s2 = inlined_call_operand.vmem [shape: f32[12,128], index: 2, kind: output, shape index: {}]
  %s3 = sld [smem:[#allocation0]]
  $region18: #{gavgpool2d.1} parent=0
    _
  %s5 = ssub.s32 1, %s3
  %s6 = scalar_select 0, %s5, %s3
  // Predicated region
  $region2: #{gavgpool2d.1} parent=0 // pred_check
    _
  $region3: #{gavgpool2d.1} parent=0 // pred_check_branch
    %8 = sbr.rel (0) target = $region5
  $region4: #{gavgpool2d.1} parent=0 // pred_region
    _
  $region5: #{gavgpool2d.1} parent=0 // pred_fallthru
    _
  // Predicated region
  $region6: #{gavgpool2d.1} parent=0 // pred_check
    _
  $region7: #{gavgpool2d.1} parent=0 // pred_check_branch
    %10 = sbr.rel (0) target = $region9
  $region8: #{gavgpool2d.1} parent=0 // pred_region
    _
  $region9: #{gavgpool2d.1} parent=0 // pred_fallthru
    _
  %v11 = vld [vmem:[%s0] sm:$0xff]
  %v12 = vld [vmem:[%s0 + $0x8] sm:$0xff]
  %v13 = vld [vmem:[%s0 + $0x10] sm:$0xff]
  %v14 = vld [vmem:[%s0 + $0x18] sm:$0xff]
  %v15 = vld [vmem:[%s0 + $0x20] sm:$0xf]
  %v16 = vld [vmem:[%s0 + $0x28] sm:$0xf]
  %v17 = vld [vmem:[%s0 + $0x30] sm:$0xf]
  %v18 = vld [vmem:[%s0 + $0x38] sm:$0xf]
  %v19 = vld [vmem:[%s1] sm:$0xff]
  %v20 = vld [vmem:[%s1 + $0x8] sm:$0xff]
  %v21 = vld [vmem:[%s1 + $0x10] sm:$0xff]
  %v22 = vld [vmem:[%s1 + $0x18] sm:$0xff]
  %v23 = vld [vmem:[%s1 + $0x20] sm:$0xff]
  %v24 = vld [vmem:[%s1 + $0x28] sm:$0xff]
  %v25 = vld [vmem:[%s1 + $0x30] sm:$0xff]
  %v26 = vld [vmem:[%s1 + $0x38] sm:$0xff]
  %v27 = vld [vmem:[%s1 + $0x40] sm:$0xff]
  %v28 = vld [vmem:[%s1 + $0x48] sm:$0xff]
  %v29 = vld [vmem:[%s1 + $0x50] sm:$0xff]
  %v30 = vld [vmem:[%s1 + $0x58] sm:$0xff]
  %v31 = vld [vmem:[%s1 + $0x60] sm:$0xff]
  %v32 = vld [vmem:[%s1 + $0x68] sm:$0xff]
  %v33 = vld [vmem:[%s1 + $0x70] sm:$0xff]
  %v34 = vld [vmem:[%s1 + $0x78] sm:$0xff]
  %v35 = vld [vmem:[%s1 + $0x80] sm:$0xff]
  %v36 = vld [vmem:[%s1 + $0x88] sm:$0xff]
  %v37 = vld [vmem:[%s1 + $0x90] sm:$0xff]
  %v38 = vld [vmem:[%s1 + $0x98] sm:$0xff]
  %v39 = vld [vmem:[%s1 + $0xa0] sm:$0xff]
  %v40 = vld [vmem:[%s1 + $0xa8] sm:$0xff]
  %v41 = vld [vmem:[%s1 + $0xb0] sm:$0xff]
  %v42 = vld [vmem:[%s1 + $0xb8] sm:$0xff]
  %v43 = vld [vmem:[%s1 + $0xc0] sm:$0xff]
  %v44 = vld [vmem:[%s1 + $0xc8] sm:$0xff]
  %v45 = vld [vmem:[%s1 + $0xd0] sm:$0xff]
  %v46 = vld [vmem:[%s1 + $0xd8] sm:$0xff]
  %v47 = vld [vmem:[%s1 + $0xe0] sm:$0xff]
  %v48 = vld [vmem:[%s1 + $0xe8] sm:$0xff]
  %v49 = vld [vmem:[%s1 + $0xf0] sm:$0xff]
  %v50 = vld [vmem:[%s1 + $0xf8] sm:$0xff]
  %v51 = vld [vmem:[%s1 + $0x100] sm:$0xff]
  %v52 = vld [vmem:[%s1 + $0x108] sm:$0xff]
  %v53 = vld [vmem:[%s1 + $0x110] sm:$0xff]
  %v54 = vld [vmem:[%s1 + $0x118] sm:$0xff]
  %v55 = vld [vmem:[%s1 + $0x120] sm:$0xff]
  %v56 = vld [vmem:[%s1 + $0x128] sm:$0xff]
  %v57 = vld [vmem:[%s1 + $0x130] sm:$0xff]
  %v58 = vld [vmem:[%s1 + $0x138] sm:$0xff]
  %v59 = vld [vmem:[%s1 + $0x140] sm:$0xff]
  %v60 = vld [vmem:[%s1 + $0x148] sm:$0xff]
  %v61 = vld [vmem:[%s1 + $0x150] sm:$0xff]
  %v62 = vld [vmem:[%s1 + $0x158] sm:$0xff]
  %v63 = vld [vmem:[%s1 + $0x160] sm:$0xff]
  %v64 = vld [vmem:[%s1 + $0x168] sm:$0xff]
  %v65 = vld [vmem:[%s1 + $0x170] sm:$0xff]
  %v66 = vld [vmem:[%s1 + $0x178] sm:$0xff]
  %v67 = vld [vmem:[%s1 + $0x180] sm:$0xff]
  %v68 = vld [vmem:[%s1 + $0x188] sm:$0xff]
  %v69 = vld [vmem:[%s1 + $0x190] sm:$0xff]
  %v70 = vld [vmem:[%s1 + $0x198] sm:$0xff]
  %v71 = vld [vmem:[%s1 + $0x1a0] sm:$0xff]
  %v72 = vld [vmem:[%s1 + $0x1a8] sm:$0xff]
  %v73 = vld [vmem:[%s1 + $0x1b0] sm:$0xff]
  %v74 = vld [vmem:[%s1 + $0x1b8] sm:$0xff]
  %v75 = vld [vmem:[%s1 + $0x1c0] sm:$0xff]
  %v76 = vld [vmem:[%s1 + $0x1c8] sm:$0xff]
  %v77 = vld [vmem:[%s1 + $0x1d0] sm:$0xff]
  %v78 = vld [vmem:[%s1 + $0x1d8] sm:$0xff]
  %v79 = vld [vmem:[%s1 + $0x1e0] sm:$0xff]
  %v80 = vld [vmem:[%s1 + $0x1e8] sm:$0xff]
  %v81 = vld [vmem:[%s1 + $0x1f0] sm:$0xff]
  %v82 = vld [vmem:[%s1 + $0x1f8] sm:$0xff]
  %83 = vmatpush.msra.mxu0 %v34
  %84 = vmatpush.msra.mxu0 %v33
  %85 = vmatpush.msra.mxu0 %v32
  %86 = vmatpush.msra.mxu0 %v31
  %87 = vmatpush.msra.mxu0 %v30
  %88 = vmatpush.msra.mxu0 %v29
  %89 = vmatpush.msra.mxu0 %v28
  %90 = vmatpush.msra.mxu0 %v27
  %91 = vmatpush.msra.mxu0 %v26
  %92 = vmatpush.msra.mxu0 %v25
  %93 = vmatpush.msra.mxu0 %v24
  %94 = vmatpush.msra.mxu0 %v23
  %95 = vmatpush.msra.mxu0 %v22
  %96 = vmatpush.msra.mxu0 %v21
  %97 = vmatpush.msra.mxu0 %v20
  %98 = vmatpush.msra.mxu0 %v19
  %99 = vmatmul.f32.gmra.mxu0 %v11
  %v100 = vpop.f32.mrf.mxu0
  %v101 = vadd.f32 0.0, %v100
  %102 = vmatmul.f32.gmra.mxu0 %v15
  %v103 = vpop.f32.mrf.mxu0
  %v104 = vadd.f32 0.0, %v103
  %105 = vdwg.mxu0
  %106 = vmatpush.msra.mxu0 %v50
  %107 = vmatpush.msra.mxu0 %v49
  %108 = vmatpush.msra.mxu0 %v48
  %109 = vmatpush.msra.mxu0 %v47
  %110 = vmatpush.msra.mxu0 %v46
  %111 = vmatpush.msra.mxu0 %v45
  %112 = vmatpush.msra.mxu0 %v44
  %113 = vmatpush.msra.mxu0 %v43
  %114 = vmatpush.msra.mxu0 %v42
  %115 = vmatpush.msra.mxu0 %v41
  %116 = vmatpush.msra.mxu0 %v40
  %117 = vmatpush.msra.mxu0 %v39
  %118 = vmatpush.msra.mxu0 %v38
  %119 = vmatpush.msra.mxu0 %v37
  %120 = vmatpush.msra.mxu0 %v36
  %121 = vmatpush.msra.mxu0 %v35
  %122 = vmatmul.f32.gmra.mxu0 %v12
  %v123 = vpop.f32.mrf.mxu0
  %v124 = vadd.f32 %v101, %v123
  %125 = vmatmul.f32.gmra.mxu0 %v16
  %v126 = vpop.f32.mrf.mxu0
  %v127 = vadd.f32 %v104, %v126
  %128 = vdwg.mxu0
  %129 = vmatpush.msra.mxu0 %v66
  %130 = vmatpush.msra.mxu0 %v65
  %131 = vmatpush.msra.mxu0 %v64
  %132 = vmatpush.msra.mxu0 %v63
  %133 = vmatpush.msra.mxu0 %v62
  %134 = vmatpush.msra.mxu0 %v61
  %135 = vmatpush.msra.mxu0 %v60
  %136 = vmatpush.msra.mxu0 %v59
  %137 = vmatpush.msra.mxu0 %v58
  %138 = vmatpush.msra.mxu0 %v57
  %139 = vmatpush.msra.mxu0 %v56
  %140 = vmatpush.msra.mxu0 %v55
  %141 = vmatpush.msra.mxu0 %v54
  %142 = vmatpush.msra.mxu0 %v53
  %143 = vmatpush.msra.mxu0 %v52
  %144 = vmatpush.msra.mxu0 %v51
  %145 = vmatmul.f32.gmra.mxu0 %v13
  %v146 = vpop.f32.mrf.mxu0
  %v147 = vadd.f32 %v124, %v146
  %148 = vmatmul.f32.gmra.mxu0 %v17
  %v149 = vpop.f32.mrf.mxu0
  %v150 = vadd.f32 %v127, %v149
  %151 = vdwg.mxu0
  %152 = vmatpush.msra.mxu0 %v82
  %153 = vmatpush.msra.mxu0 %v81
  %154 = vmatpush.msra.mxu0 %v80
  %155 = vmatpush.msra.mxu0 %v79
  %156 = vmatpush.msra.mxu0 %v78
  %157 = vmatpush.msra.mxu0 %v77
  %158 = vmatpush.msra.mxu0 %v76
  %159 = vmatpush.msra.mxu0 %v75
  %160 = vmatpush.msra.mxu0 %v74
  %161 = vmatpush.msra.mxu0 %v73
  %162 = vmatpush.msra.mxu0 %v72
  %163 = vmatpush.msra.mxu0 %v71
  %164 = vmatpush.msra.mxu0 %v70
  %165 = vmatpush.msra.mxu0 %v69
  %166 = vmatpush.msra.mxu0 %v68
  %167 = vmatpush.msra.mxu0 %v67
  %168 = vmatmul.f32.gmra.mxu0 %v14
  %v169 = vpop.f32.mrf.mxu0
  %v170 = vadd.f32 %v147, %v169
  %171 = vmatmul.f32.gmra.mxu0 %v18
  %v172 = vpop.f32.mrf.mxu0
  %v173 = vadd.f32 %v150, %v172
  %174 = vdwg.mxu0
  %175 = vst [vmem:[%s2] sm:$0xff] %v170
  %176 = vst [vmem:[%s2 + $0x8] sm:$0xf] %v173
  // Predicated region
  $region10: #{gavgpool2d.1} parent=0 // pred_check
    _
  $region11: #{gavgpool2d.1} parent=0 // pred_check_branch
    %178 = sbr.rel (0) target = $region13
  $region12: #{gavgpool2d.1} parent=0 // pred_region
    _
  $region13: #{gavgpool2d.1} parent=0 // pred_fallthru
    _
  // Predicated region
  $region14: #{gavgpool2d.1} parent=0 // pred_check
    _
  $region15: #{gavgpool2d.1} parent=0 // pred_check_branch
    %180 = sbr.rel (0) target = $region17
  $region16: #{gavgpool2d.1} parent=0 // pred_region
    _
  $region17: #{gavgpool2d.1} parent=0 // pred_fallthru
    _

</llo_original>
